<compile_context>
chip_gen: v7x
topology: tpu7x:2x2x1
jax: 0.10.0
libtpu: 0.0.40
codegen_flags: <defaults>
</compile_context>

<pallas_src>
import jax
import jax.numpy as jnp
import numpy as np
from jax.experimental import pallas as pl
from jax.experimental.pallas import tpu as pltpu


def _make_char_rnn_kernel(T, B, I, H):
    def kernel(x_ref, h0_ref, c0_ref,
               wih_t_ref, whh_t_ref, b_ref,
               wfc_t_ref, bfc_ref,
               y_ref, h_out_ref, c_out_ref,
               gx_ref, hall_ref):
        t = pl.program_id(0)

        @pl.when(t == 0)
        def _():
            # Recurrent carry lives in the (resident) output blocks.
            h_out_ref[...] = h0_ref[...]
            c_out_ref[...] = c0_ref[...]
            # Input projection for ALL timesteps in one MXU matmul; both LSTM
            # biases are pre-fused into b_ref.
            gx_ref[...] = (
                jnp.dot(x_ref[...], wih_t_ref[...],
                        preferred_element_type=jnp.float32)
                + b_ref[...])

        row = pl.multiple_of(t * B, B)
        gx_t = gx_ref[pl.ds(row, B), :]                        # (B, 4H)
        h = h_out_ref[...].astype(jnp.float32)                 # (B, H)
        c = c_out_ref[...].astype(jnp.float32)                 # (B, H)

        # Only the recurrent matmul + elementwise sit on the sequential path.
        gates = gx_t + jnp.dot(h, whh_t_ref[...],
                               preferred_element_type=jnp.float32)  # (B, 4H)

        i = jax.nn.sigmoid(gates[:, 0 * H:1 * H])
        f = jax.nn.sigmoid(gates[:, 1 * H:2 * H])
        g = jnp.tanh(gates[:, 2 * H:3 * H])
        o = jax.nn.sigmoid(gates[:, 3 * H:4 * H])

        c_new = f * c + i * g
        h_new = o * jnp.tanh(c_new)

        h_out_ref[...] = h_new.astype(h_out_ref.dtype)
        c_out_ref[...] = c_new.astype(c_out_ref.dtype)
        hall_ref[pl.ds(row, B), :] = h_new

        @pl.when(t == T - 1)
        def _():
            # fc head for all timesteps in one MXU matmul + one dense store.
            y_ref[...] = (
                jnp.dot(hall_ref[...], wfc_t_ref[...],
                        preferred_element_type=jnp.float32)
                + bfc_ref[...]).astype(y_ref.dtype)

    return kernel


def char_rnn_sequence(x_seq, hx, params):
    """Run T LSTMCell + fc steps inside ONE pallas_call.

    x_seq: (T, B, I); hx: (h0, c0), each (B, H).
    Returns (y_seq: (T, B, I), (h_T, c_T)).
    """
    h0, c0 = hx
    T, B, I = x_seq.shape
    H = h0.shape[1]

    # Wrapper-side prep: transpose weights for (B,K)@(K,N), fuse the biases.
    wih_t = params["w_ih"].T                                    # (I, 4H)
    whh_t = params["w_hh"].T                                    # (H, 4H)
    b = (params["b_ih"] + params["b_hh"]).reshape(1, 4 * H)     # (1, 4H)
    wfc_t = params["w_fc"].T                                    # (H, I)
    bfc = params["b_fc"].reshape(1, I)                          # (1, I)

    x_flat = x_seq.reshape(T * B, I)

    def const(shp):
        # Constant index_map -> block DMA'd once and resident for all T steps.
        return pl.BlockSpec(shp, lambda t: tuple(0 for _ in shp))

    kernel = _make_char_rnn_kernel(T, B, I, H)

    y_flat, h_n, c_n = pl.pallas_call(
        kernel,
        out_shape=(
            jax.ShapeDtypeStruct((T * B, I), x_seq.dtype),
            jax.ShapeDtypeStruct((B, H), h0.dtype),
            jax.ShapeDtypeStruct((B, H), c0.dtype),
        ),
        grid=(T,),
        in_specs=[
            const((T * B, I)),       # x (all steps, resident)
            const((B, H)),           # h0 (read once at t==0)
            const((B, H)),           # c0
            const((I, 4 * H)),       # W_ih^T
            const((H, 4 * H)),       # W_hh^T
            const((1, 4 * H)),       # fused bias
            const((H, I)),           # W_fc^T
            const((1, I)),           # b_fc
        ],
        out_specs=(
            const((T * B, I)),       # y (written once at t==T-1)
            const((B, H)),           # h carry / final h
            const((B, H)),           # c carry / final c
        ),
        scratch_shapes=[
            pltpu.VMEM((T * B, 4 * H), jnp.float32),   # hoisted input proj
            pltpu.VMEM((T * B, H), jnp.float32),       # per-step h' stash
        ],
        # Recurrence over t -> must be sequential.
        compiler_params=pltpu.CompilerParams(
            dimension_semantics=("arbitrary",)),
    )(x_flat, h0, c0, wih_t, whh_t, b, wfc_t, bfc)

    return y_flat.reshape(T, B, I), (h_n, c_n)


def char_rnn_forward(x, hx, params):
    """Module-equivalent forward: x (B, I), hx=(h, c) -> (y, (h', c'))."""
    y_seq, hx_n = char_rnn_sequence(x[None], hx, params)
    return y_seq[0], hx_n


def init_params(key, input_size, hidden_size):
    """Deterministic init mimicking PyTorch's U(-1/sqrt(H), 1/sqrt(H))."""
    k = 1.0 / np.sqrt(hidden_size)
    ks = jax.random.split(key, 6)
    u = lambda kk, shape: jax.random.uniform(kk, shape, jnp.float32, -k, k)
    return {
        "w_ih": u(ks[0], (4 * hidden_size, input_size)),
        "w_hh": u(ks[1], (4 * hidden_size, hidden_size)),
        "b_ih": u(ks[2], (4 * hidden_size,)),
        "b_hh": u(ks[3], (4 * hidden_size,)),
        "w_fc": u(ks[4], (input_size, hidden_size)),
        "b_fc": u(ks[5], (input_size,)),
    }


def reference_forward(x, hx, params):
    """Pure-JAX reference of the PyTorch single-step forward."""
    h0, c0 = hx
    H = h0.shape[1]
    gates = (x @ params["w_ih"].T + params["b_ih"]
             + h0 @ params["w_hh"].T + params["b_hh"])
    i = jax.nn.sigmoid(gates[:, 0 * H:1 * H])
    f = jax.nn.sigmoid(gates[:, 1 * H:2 * H])
    g = jnp.tanh(gates[:, 2 * H:3 * H])
    o = jax.nn.sigmoid(gates[:, 3 * H:4 * H])
    c1 = f * c0 + i * g
    h1 = o * jnp.tanh(c1)
    y = h1 @ params["w_fc"].T + params["b_fc"]
    return y, (h1, c1)


def reference_sequence(x_seq, hx, params):
    def step(carry, x_t):
        y, carry = reference_forward(x_t, carry, params)
        return carry, y
    carry, ys = jax.lax.scan(step, hx, x_seq)
    return ys, carry


if __name__ == "__main__":
    input_size, hidden_size, batch, seq_len = 16, 32, 8, 8

    key = jax.random.PRNGKey(0)
    kx, kh, kc, kp = jax.random.split(key, 4)
    x_seq = jax.random.normal(kx, (seq_len, batch, input_size), jnp.float32)
    h0 = jax.random.normal(kh, (batch, hidden_size), jnp.float32)
    c0 = jax.random.normal(kc, (batch, hidden_size), jnp.float32)
    params = init_params(kp, input_size, hidden_size)

    # 1) Module-equivalent single step (T == 1 path of the same kernel).
    y, (h1, c1) = char_rnn_forward(x_seq[0], (h0, c0), params)
    jax.block_until_ready((y, h1, c1))
    y_ref, (h1_ref, c1_ref) = reference_forward(x_seq[0], (h0, c0), params)
    assert np.allclose(np.asarray(y), np.asarray(y_ref), atol=1e-5, rtol=1e-5)
    assert np.allclose(np.asarray(h1), np.asarray(h1_ref), atol=1e-5, rtol=1e-5)
    assert np.allclose(np.asarray(c1), np.asarray(c1_ref), atol=1e-5, rtol=1e-5)

    # 2) Full sequence in one pallas_call (main perf path).
    ys, (hT, cT) = char_rnn_sequence(x_seq, (h0, c0), params)
    jax.block_until_ready((ys, hT, cT))
    ys_ref, (hT_ref, cT_ref) = reference_sequence(x_seq, (h0, c0), params)
    assert np.allclose(np.asarray(ys), np.asarray(ys_ref), atol=1e-3, rtol=1e-3)
    assert np.allclose(np.asarray(hT), np.asarray(hT_ref), atol=1e-3, rtol=1e-3)
    assert np.allclose(np.asarray(cT), np.asarray(cT_ref), atol=1e-3, rtol=1e-3)

    print("KERNEL_OK")
</pallas_src>

<mosaic_0001>
module attributes {stable_mosaic.version = 11 : i64} {
  func.func @kernel(%arg0: i32, %arg1: memref<8x16xf32, #tpu.memory_space<vmem>>, %arg2: memref<8x32xf32, #tpu.memory_space<vmem>>, %arg3: memref<8x32xf32, #tpu.memory_space<vmem>>, %arg4: memref<16x128xf32, #tpu.memory_space<vmem>>, %arg5: memref<32x128xf32, #tpu.memory_space<vmem>>, %arg6: memref<1x128xf32, #tpu.memory_space<vmem>>, %arg7: memref<32x16xf32, #tpu.memory_space<vmem>>, %arg8: memref<1x16xf32, #tpu.memory_space<vmem>>, %arg9: memref<8x16xf32, #tpu.memory_space<vmem>>, %arg10: memref<8x32xf32, #tpu.memory_space<vmem>>, %arg11: memref<8x32xf32, #tpu.memory_space<vmem>>, %arg12: memref<8x128xf32, #tpu.memory_space<vmem>>, %arg13: memref<8x32xf32, #tpu.memory_space<vmem>>) attributes {dimension_semantics = [#tpu.dimension_semantics<arbitrary>], iteration_bounds = array<i64: 1>, scalar_prefetch = 0 : i64, scratch_operands = 2 : i64, tpu.core_type = #tpu.core_type<tc>, window_params = [{pipeline_mode = #tpu.pipeline_mode<synchronous>, transform_indices = @transform_0, window_bounds = array<i64: 8, 16>}, {pipeline_mode = #tpu.pipeline_mode<synchronous>, transform_indices = @transform_1, window_bounds = array<i64: 8, 32>}, {pipeline_mode = #tpu.pipeline_mode<synchronous>, transform_indices = @transform_2, window_bounds = array<i64: 8, 32>}, {pipeline_mode = #tpu.pipeline_mode<synchronous>, transform_indices = @transform_3, window_bounds = array<i64: 16, 128>}, {pipeline_mode = #tpu.pipeline_mode<synchronous>, transform_indices = @transform_4, window_bounds = array<i64: 32, 128>}, {pipeline_mode = #tpu.pipeline_mode<synchronous>, transform_indices = @transform_5, window_bounds = array<i64: 1, 128>}, {pipeline_mode = #tpu.pipeline_mode<synchronous>, transform_indices = @transform_6, window_bounds = array<i64: 32, 16>}, {pipeline_mode = #tpu.pipeline_mode<synchronous>, transform_indices = @transform_7, window_bounds = array<i64: 1, 16>}, {pipeline_mode = #tpu.pipeline_mode<synchronous>, transform_indices = @transform_8, window_bounds = array<i64: 8, 16>}, {pipeline_mode = #tpu.pipeline_mode<synchronous>, transform_indices = @transform_9, window_bounds = array<i64: 8, 32>}, {pipeline_mode = #tpu.pipeline_mode<synchronous>, transform_indices = @transform_10, window_bounds = array<i64: 8, 32>}]} {
    %c0_i32 = arith.constant 0 : i32
    %0 = arith.cmpi eq, %arg0, %c0_i32 : i32
    %1 = arith.extui %0 : i1 to i32
    %c0_i32_0 = arith.constant 0 : i32
    %2 = arith.cmpi ne, %1, %c0_i32_0 : i32
    scf.if %2 {
      %c0_17 = arith.constant 0 : index
      %c0_18 = arith.constant 0 : index
      %44 = vector.load %arg2[%c0_17, %c0_18] : memref<8x32xf32, #tpu.memory_space<vmem>>, vector<8x32xf32>
      %c0_19 = arith.constant 0 : index
      %c0_20 = arith.constant 0 : index
      %45 = vector.load %arg10[%c0_19, %c0_20] : memref<8x32xf32, #tpu.memory_space<vmem>>, vector<8x32xf32>
      tpu.vector_store %arg10[%c0_19, %c0_20], %44 {strides = array<i32>} : memref<8x32xf32, #tpu.memory_space<vmem>>, vector<8x32xf32>,
      %c0_21 = arith.constant 0 : index
      %c0_22 = arith.constant 0 : index
      %46 = vector.load %arg3[%c0_21, %c0_22] : memref<8x32xf32, #tpu.memory_space<vmem>>, vector<8x32xf32>
      %c0_23 = arith.constant 0 : index
      %c0_24 = arith.constant 0 : index
      %47 = vector.load %arg11[%c0_23, %c0_24] : memref<8x32xf32, #tpu.memory_space<vmem>>, vector<8x32xf32>
      tpu.vector_store %arg11[%c0_23, %c0_24], %46 {strides = array<i32>} : memref<8x32xf32, #tpu.memory_space<vmem>>, vector<8x32xf32>,
      %c0_25 = arith.constant 0 : index
      %c0_26 = arith.constant 0 : index
      %48 = vector.load %arg1[%c0_25, %c0_26] : memref<8x16xf32, #tpu.memory_space<vmem>>, vector<8x16xf32>
      %c0_27 = arith.constant 0 : index
      %c0_28 = arith.constant 0 : index
      %49 = vector.load %arg4[%c0_27, %c0_28] : memref<16x128xf32, #tpu.memory_space<vmem>>, vector<16x128xf32>
      %cst_29 = arith.constant dense<0.000000e+00> : vector<8x128xf32>
      %50 = tpu.matmul %48, %49, %cst_29 {dimension_numbers = #tpu.dot_dimension_numbers<[1], [0], [0], [1], [0, 0, 1, 1], [], []>} : vector<8x16xf32>, vector<16x128xf32>, vector<8x128xf32> -> vector<8x128xf32>
      %c0_30 = arith.constant 0 : index
      %c0_31 = arith.constant 0 : index
      %51 = vector.load %arg6[%c0_30, %c0_31] : memref<1x128xf32, #tpu.memory_space<vmem>>, vector<1x128xf32>
      %52 = vector.broadcast %51 : vector<1x128xf32> to vector<8x128xf32>
      %53 = arith.addf %50, %52 : vector<8x128xf32>
      %c0_32 = arith.constant 0 : index
      %c0_33 = arith.constant 0 : index
      %54 = vector.load %arg12[%c0_32, %c0_33] : memref<8x128xf32, #tpu.memory_space<vmem>>, vector<8x128xf32>
      tpu.vector_store %arg12[%c0_32, %c0_33], %53 {strides = array<i32>} : memref<8x128xf32, #tpu.memory_space<vmem>>, vector<8x128xf32>,
    } else {
    }
    %c8_i32 = arith.constant 8 : i32
    %3 = arith.muli %arg0, %c8_i32 : i32
    %4 = tpu.assume_multiple %3, 8 : i32
    %5 = arith.index_cast %4 : i32 to index
    %c0 = arith.constant 0 : index
    %6 = vector.load %arg12[%5, %c0] : memref<8x128xf32, #tpu.memory_space<vmem>>, vector<8x128xf32>
    %c0_1 = arith.constant 0 : index
    %c0_2 = arith.constant 0 : index
    %7 = vector.load %arg10[%c0_1, %c0_2] : memref<8x32xf32, #tpu.memory_space<vmem>>, vector<8x32xf32>
    %c0_3 = arith.constant 0 : index
    %c0_4 = arith.constant 0 : index
    %8 = vector.load %arg11[%c0_3, %c0_4] : memref<8x32xf32, #tpu.memory_space<vmem>>, vector<8x32xf32>
    %c0_5 = arith.constant 0 : index
    %c0_6 = arith.constant 0 : index
    %9 = vector.load %arg5[%c0_5, %c0_6] : memref<32x128xf32, #tpu.memory_space<vmem>>, vector<32x128xf32>
    %cst = arith.constant dense<0.000000e+00> : vector<8x128xf32>
    %10 = tpu.matmul %7, %9, %cst {dimension_numbers = #tpu.dot_dimension_numbers<[1], [0], [0], [1], [0, 0, 1, 1], [], []>} : vector<8x32xf32>, vector<32x128xf32>, vector<8x128xf32> -> vector<8x128xf32>
    %11 = arith.addf %6, %10 : vector<8x128xf32>
    %12 = vector.extract_strided_slice %11 {offsets = [0, 0], sizes = [8, 32], strides = [1, 1]} : vector<8x128xf32> to vector<8x32xf32>
    %13 = arith.negf %12 : vector<8x32xf32>
    %14 = math.exp %13 : vector<8x32xf32>
    %cst_7 = arith.constant 1.000000e+00 : f32
    %15 = vector.broadcast %cst_7 : f32 to vector<8x32xf32>
    %16 = arith.addf %15, %14 : vector<8x32xf32>
    %17 = arith.divf %15, %16 : vector<8x32xf32>
    %18 = vector.extract_strided_slice %11 {offsets = [0, 32], sizes = [8, 32], strides = [1, 1]} : vector<8x128xf32> to vector<8x32xf32>
    %19 = arith.negf %18 : vector<8x32xf32>
    %20 = math.exp %19 : vector<8x32xf32>
    %cst_8 = arith.constant 1.000000e+00 : f32
    %21 = vector.broadcast %cst_8 : f32 to vector<8x32xf32>
    %22 = arith.addf %21, %20 : vector<8x32xf32>
    %23 = arith.divf %21, %22 : vector<8x32xf32>
    %24 = vector.extract_strided_slice %11 {offsets = [0, 64], sizes = [8, 32], strides = [1, 1]} : vector<8x128xf32> to vector<8x32xf32>
    %25 = math.tanh %24 : vector<8x32xf32>
    %26 = vector.extract_strided_slice %11 {offsets = [0, 96], sizes = [8, 32], strides = [1, 1]} : vector<8x128xf32> to vector<8x32xf32>
    %27 = arith.negf %26 : vector<8x32xf32>
    %28 = math.exp %27 : vector<8x32xf32>
    %cst_9 = arith.constant 1.000000e+00 : f32
    %29 = vector.broadcast %cst_9 : f32 to vector<8x32xf32>
    %30 = arith.addf %29, %28 : vector<8x32xf32>
    %31 = arith.divf %29, %30 : vector<8x32xf32>
    %32 = arith.mulf %23, %8 : vector<8x32xf32>
    %33 = arith.mulf %17, %25 : vector<8x32xf32>
    %34 = arith.addf %32, %33 : vector<8x32xf32>
    %35 = math.tanh %34 : vector<8x32xf32>
    %36 = arith.mulf %31, %35 : vector<8x32xf32>
    %c0_10 = arith.constant 0 : index
    %c0_11 = arith.constant 0 : index
    %37 = vector.load %arg10[%c0_10, %c0_11] : memref<8x32xf32, #tpu.memory_space<vmem>>, vector<8x32xf32>
    tpu.vector_store %arg10[%c0_10, %c0_11], %36 {strides = array<i32>} : memref<8x32xf32, #tpu.memory_space<vmem>>, vector<8x32xf32>,
    %c0_12 = arith.constant 0 : index
    %c0_13 = arith.constant 0 : index
    %38 = vector.load %arg11[%c0_12, %c0_13] : memref<8x32xf32, #tpu.memory_space<vmem>>, vector<8x32xf32>
    tpu.vector_store %arg11[%c0_12, %c0_13], %34 {strides = array<i32>} : memref<8x32xf32, #tpu.memory_space<vmem>>, vector<8x32xf32>,
    %39 = arith.index_cast %4 : i32 to index
    %c0_14 = arith.constant 0 : index
    %40 = vector.load %arg13[%39, %c0_14] : memref<8x32xf32, #tpu.memory_space<vmem>>, vector<8x32xf32>
    tpu.vector_store %arg13[%39, %c0_14], %36 {strides = array<i32>} : memref<8x32xf32, #tpu.memory_space<vmem>>, vector<8x32xf32>,
    %c0_i32_15 = arith.constant 0 : i32
    %41 = arith.cmpi eq, %arg0, %c0_i32_15 : i32
    %42 = arith.extui %41 : i1 to i32
    %c0_i32_16 = arith.constant 0 : i32
    %43 = arith.cmpi ne, %42, %c0_i32_16 : i32
    scf.if %43 {
      %c0_17 = arith.constant 0 : index
      %c0_18 = arith.constant 0 : index
      %44 = vector.load %arg13[%c0_17, %c0_18] : memref<8x32xf32, #tpu.memory_space<vmem>>, vector<8x32xf32>
      %c0_19 = arith.constant 0 : index
      %c0_20 = arith.constant 0 : index
      %45 = vector.load %arg7[%c0_19, %c0_20] : memref<32x16xf32, #tpu.memory_space<vmem>>, vector<32x16xf32>
      %cst_21 = arith.constant dense<0.000000e+00> : vector<8x16xf32>
      %46 = tpu.matmul %44, %45, %cst_21 {dimension_numbers = #tpu.dot_dimension_numbers<[1], [0], [0], [1], [0, 0, 1, 1], [], []>} : vector<8x32xf32>, vector<32x16xf32>, vector<8x16xf32> -> vector<8x16xf32>
      %c0_22 = arith.constant 0 : index
      %c0_23 = arith.constant 0 : index
      %47 = vector.load %arg8[%c0_22, %c0_23] : memref<1x16xf32, #tpu.memory_space<vmem>>, vector<1x16xf32>
      %48 = vector.broadcast %47 : vector<1x16xf32> to vector<8x16xf32>
      %49 = arith.addf %46, %48 : vector<8x16xf32>
      %c0_24 = arith.constant 0 : index
      %c0_25 = arith.constant 0 : index
      %50 = vector.load %arg9[%c0_24, %c0_25] : memref<8x16xf32, #tpu.memory_space<vmem>>, vector<8x16xf32>
      tpu.vector_store %arg9[%c0_24, %c0_25], %49 {strides = array<i32>} : memref<8x16xf32, #tpu.memory_space<vmem>>, vector<8x16xf32>,
    } else {
    }
    return
  }
  func.func @transform_0(%arg0: i32) -> (i32, i32) {
    %c0_i32 = arith.constant 0 : i32
    %c0_i32_0 = arith.constant 0 : i32
    %c0_i32_1 = arith.constant 0 : i32
    return %c0_i32, %c0_i32_0 : i32, i32
  }
  func.func @transform_1(%arg0: i32) -> (i32, i32) {
    %c0_i32 = arith.constant 0 : i32
    %c0_i32_0 = arith.constant 0 : i32
    %c0_i32_1 = arith.constant 0 : i32
    return %c0_i32, %c0_i32_0 : i32, i32
  }
  func.func @transform_2(%arg0: i32) -> (i32, i32) {
    %c0_i32 = arith.constant 0 : i32
    %c0_i32_0 = arith.constant 0 : i32
    %c0_i32_1 = arith.constant 0 : i32
    return %c0_i32, %c0_i32_0 : i32, i32
  }
  func.func @transform_3(%arg0: i32) -> (i32, i32) {
    %c0_i32 = arith.constant 0 : i32
    %c0_i32_0 = arith.constant 0 : i32
    %c0_i32_1 = arith.constant 0 : i32
    return %c0_i32, %c0_i32_0 : i32, i32
  }
  func.func @transform_4(%arg0: i32) -> (i32, i32) {
    %c0_i32 = arith.constant 0 : i32
    %c0_i32_0 = arith.constant 0 : i32
    %c0_i32_1 = arith.constant 0 : i32
    return %c0_i32, %c0_i32_0 : i32, i32
  }
  func.func @transform_5(%arg0: i32) -> (i32, i32) {
    %c0_i32 = arith.constant 0 : i32
    %c0_i32_0 = arith.constant 0 : i32
    %c0_i32_1 = arith.constant 0 : i32
    return %c0_i32, %c0_i32_0 : i32, i32
  }
  func.func @transform_6(%arg0: i32) -> (i32, i32) {
    %c0_i32 = arith.constant 0 : i32
    %c0_i32_0 = arith.constant 0 : i32
    %c0_i32_1 = arith.constant 0 : i32
    return %c0_i32, %c0_i32_0 : i32, i32
  }
  func.func @transform_7(%arg0: i32) -> (i32, i32) {
    %c0_i32 = arith.constant 0 : i32
    %c0_i32_0 = arith.constant 0 : i32
    %c0_i32_1 = arith.constant 0 : i32
    return %c0_i32, %c0_i32_0 : i32, i32
  }
  func.func @transform_8(%arg0: i32) -> (i32, i32) {
    %c0_i32 = arith.constant 0 : i32
    %c0_i32_0 = arith.constant 0 : i32
    %c0_i32_1 = arith.constant 0 : i32
    return %c0_i32, %c0_i32_0 : i32, i32
  }
  func.func @transform_9(%arg0: i32) -> (i32, i32) {
    %c0_i32 = arith.constant 0 : i32
    %c0_i32_0 = arith.constant 0 : i32
    %c0_i32_1 = arith.constant 0 : i32
    return %c0_i32, %c0_i32_0 : i32, i32
  }
  func.func @transform_10(%arg0: i32) -> (i32, i32) {
    %c0_i32 = arith.constant 0 : i32
    %c0_i32_0 = arith.constant 0 : i32
    %c0_i32_1 = arith.constant 0 : i32
    return %c0_i32, %c0_i32_0 : i32, i32
  }
}

</mosaic_0001>

<llo_original>
// kernel: tpu_custom_call.1
$region0: #{tpu_custom_call.1}
  #allocation0 [shape = 'u32[]', space=smem, size = 0x4, offset = 0x4, fixed_abs, tag = 'smem constant byte address 0x4 - core index']
  #allocation1 [shape = 'u32[144,128]{1,0:T(1,128)}', space=vmem, size = 0x12000, scoped, tag = 'internal scratch']
  #allocation2 [shape = 'f32[8,128]{1,0:T(8,128)}', space=vmem, size = 0x1000, scoped, tag = 'scratch operand']
  #allocation3 [shape = 'f32[8,32]{1,0:T(8,128)}', space=vmem, size = 0x1000, scoped, tag = 'scratch operand']
  %s0 = inlined_call_operand.hbm [shape: f32[8,16], index: 0, kind: input, shape index: {}]
  %s1 = inlined_call_operand.hbm [shape: f32[8,32], index: 1, kind: input, shape index: {}]
  %s2 = inlined_call_operand.hbm [shape: f32[8,32], index: 2, kind: input, shape index: {}]
  %s3 = inlined_call_operand.vmem [shape: f32[16,128], index: 3, kind: input, shape index: {}]
  %s4 = inlined_call_operand.vmem [shape: f32[32,128], index: 4, kind: input, shape index: {}]
  %s5 = inlined_call_operand.vmem [shape: f32[1,128], index: 5, kind: input, shape index: {}]
  %s6 = inlined_call_operand.vmem [shape: f32[32,16], index: 6, kind: input, shape index: {}]
  %s7 = inlined_call_operand.vmem [shape: f32[1,16], index: 7, kind: input, shape index: {}]
  %s8 = inlined_call_operand.hbm [shape: f32[8,16], index: 8, kind: output, shape index: {0}]
  %s9 = inlined_call_operand.hbm [shape: f32[8,32], index: 9, kind: output, shape index: {1}]
  %s10 = inlined_call_operand.hbm [shape: f32[8,32], index: 10, kind: output, shape index: {2}]
  %11 = xla_tuple %s8, %s9, %s10
  %s12 = sld [smem:[#allocation0]]
  $region78: #{tpu_custom_call.1} parent=0
    _
  %s14 = ssub.s32 1, %s12
  %s15 = scalar_select 0, %s14, %s12
  $region1: #{tpu_custom_call.1} parent=0
    #allocation4 [shape = 'u8[4096]{0}', space=vmem, size = 0x1000, scoped, tag = 'input window, operand 0, single buffered']
    #allocation5 [shape = 's32[1]{0}', space=sflag, size = 0x4, scoped, tag = 'scoped memory for tpu_custom_call.1']
    #allocation6 [shape = 's32[1]{0}', space=sflag, size = 0x4, scoped, tag = 'scoped memory for tpu_custom_call.1']
    #allocation7 [shape = 'u8[4096]{0}', space=vmem, size = 0x1000, scoped, tag = 'input window, operand 1, single buffered']
    #allocation8 [shape = 's32[1]{0}', space=sflag, size = 0x4, scoped, tag = 'scoped memory for tpu_custom_call.1']
    #allocation9 [shape = 'u8[4096]{0}', space=vmem, size = 0x1000, scoped, tag = 'input window, operand 2, single buffered']
    #allocation10 [shape = 'u8[4096]{0}', space=vmem, size = 0x1000, scoped, tag = 'output window, operand 0, single buffered']
    #allocation11 [shape = 'u8[4096]{0}', space=vmem, size = 0x1000, scoped, tag = 'output window, operand 1, single buffered']
    #allocation12 [shape = 's32[1]{0}', space=sflag, size = 0x4, scoped, tag = 'scoped memory for tpu_custom_call.1']
    #allocation13 [shape = 'u8[4096]{0}', space=vmem, size = 0x1000, scoped, tag = 'output window, operand 2, single buffered']
    %16 = vsyncpa [#allocation5], 0
    %17 = vsyncpa [#allocation8], 0
    %18 = vsyncpa [#allocation6], 0
    %19 = vsyncpa [#allocation12], 0
    // Predicated region
    $region2: #{tpu_custom_call.1} parent=1 // pred_check
      _
    $region3: #{tpu_custom_call.1} parent=1 // pred_check_branch
      %21 = sbr.rel (0) target = $region5
    $region4: #{tpu_custom_call.1} parent=1 // pred_region
      %s23 = ssub.s32 128, 128
      %24 = vsyncadd [#allocation5], %s23
      %s26 = sshll.u32 [#allocation4], 4
      %s27 = int_to_ptr.vmem [resolvable:$true] %s26
      %29 = dma.hbm_to_vmem [thread:$0]  %s0, 128, %s27, [#allocation5]
    $region5: #{tpu_custom_call.1} parent=1 // pred_fallthru
      _
    // Predicated region
    $region6: #{tpu_custom_call.1} parent=1 // pred_check
      _
    $region7: #{tpu_custom_call.1} parent=1 // pred_check_branch
      %31 = sbr.rel (0) target = $region9
    $region8: #{tpu_custom_call.1} parent=1 // pred_region
      %s33 = ssub.s32 128, 128
      %34 = vsyncadd [#allocation8], %s33
      %s36 = sshll.u32 [#allocation7], 4
      %s37 = int_to_ptr.vmem [resolvable:$true] %s36
      %39 = dma.hbm_to_vmem [thread:$0]  %s1, 128, %s37, [#allocation8]
    $region9: #{tpu_custom_call.1} parent=1 // pred_fallthru
      _
    // Predicated region
    $region10: #{tpu_custom_call.1} parent=1 // pred_check
      _
    $region11: #{tpu_custom_call.1} parent=1 // pred_check_branch
      %41 = sbr.rel (0) target = $region13
    $region12: #{tpu_custom_call.1} parent=1 // pred_region
      %s43 = ssub.s32 128, 128
      %44 = vsyncadd [#allocation8], %s43
      %s46 = sshll.u32 [#allocation9], 4
      %s47 = int_to_ptr.vmem [resolvable:$true] %s46
      %49 = dma.hbm_to_vmem [thread:$0]  %s2, 128, %s47, [#allocation8]
    $region13: #{tpu_custom_call.1} parent=1 // pred_fallthru
      _
    // Predicated region
    $region14: #{tpu_custom_call.1} parent=1 // pred_check
      _
    $region15: #{tpu_custom_call.1} parent=1 // pred_check_branch
      %51 = sbr.rel (0) target = $region17
    $region16: #{tpu_custom_call.1} parent=1 // pred_region
      _
    $region17: #{tpu_custom_call.1} parent=1 // pred_fallthru
      _
    // Predicated region
    $region18: #{tpu_custom_call.1} parent=1 // pred_check
      _
    $region19: #{tpu_custom_call.1} parent=1 // pred_check_branch
      %53 = sbr.rel (0) target = $region21
    $region20: #{tpu_custom_call.1} parent=1 // pred_region
      _
    $region21: #{tpu_custom_call.1} parent=1 // pred_fallthru
      _
    // Predicated region
    $region22: #{tpu_custom_call.1} parent=1 // pred_check
      _
    $region23: #{tpu_custom_call.1} parent=1 // pred_check_branch
      %55 = sbr.rel (0) target = $region25
    $region24: #{tpu_custom_call.1} parent=1 // pred_region
      _
    $region25: #{tpu_custom_call.1} parent=1 // pred_fallthru
      _
    // Predicated region
    $region26: #{tpu_custom_call.1} parent=1 // pred_check
      _
    $region27: #{tpu_custom_call.1} parent=1 // pred_check_branch
      %57 = sbr.rel (0) target = $region29
    $region28: #{tpu_custom_call.1} parent=1 // pred_region
      _
    $region29: #{tpu_custom_call.1} parent=1 // pred_fallthru
      _
    // Predicated region
    $region30: #{tpu_custom_call.1} parent=1 // pred_check
      _
    $region31: #{tpu_custom_call.1} parent=1 // pred_check_branch
      %59 = sbr.rel (0) target = $region33
    $region32: #{tpu_custom_call.1} parent=1 // pred_region
      _
    $region33: #{tpu_custom_call.1} parent=1 // pred_fallthru
      _
    // Predicated region
    $region34: #{tpu_custom_call.1} parent=1 // pred_check
      _
    $region35: #{tpu_custom_call.1} parent=1 // pred_check_branch
      %61 = sbr.rel (0) target = $region37
    $region36: #{tpu_custom_call.1} parent=1 // pred_region
      %62 = dma.done [#allocation5], 128
    $region37: #{tpu_custom_call.1} parent=1 // pred_fallthru
      _
    // Predicated region
    $region38: #{tpu_custom_call.1} parent=1 // pred_check
      _
    $region39: #{tpu_custom_call.1} parent=1 // pred_check_branch
      %64 = sbr.rel (0) target = $region41
    $region40: #{tpu_custom_call.1} parent=1 // pred_region
      %65 = dma.done [#allocation8], 128
    $region41: #{tpu_custom_call.1} parent=1 // pred_fallthru
      _
    // Predicated region
    $region42: #{tpu_custom_call.1} parent=1 // pred_check
      _
    $region43: #{tpu_custom_call.1} parent=1 // pred_check_branch
      %67 = sbr.rel (0) target = $region45
    $region44: #{tpu_custom_call.1} parent=1 // pred_region
      %68 = dma.done [#allocation8], 128
    $region45: #{tpu_custom_call.1} parent=1 // pred_fallthru
      _
    %p69 = scmp.eq.s32.totalorder 0, 0
    // Predicated region
    $region46: #{tpu_custom_call.1} parent=1 // pred_check
      %p70 = pneg %p69
    $region47: #{tpu_custom_call.1} parent=1 // pred_check_branch
      %72 = sbr.rel (%p70) target = $region49
    $region48: #{tpu_custom_call.1} parent=1 // pred_region
      %v73 = vld [vmem:[#allocation7] sm:$0xff]
      %vm74 = vcmask 261120
      %75 = vst.msk [vmem:[#allocation11] sm:$0xff] %vm74, %v73
      %v76 = vld [vmem:[#allocation9] sm:$0xff]
      %77 = vst.msk [vmem:[#allocation13] sm:$0xff] %vm74, %v76
      %v78 = vld [vmem:[#allocation4] sm:$0xff]
      %v79 = vld [vmem:[%s3] sm:$0xff]
      %v80 = vld [vmem:[%s3 + $0x8] sm:$0xff]
      %v81 = vld [vmem:[%s5] sm:$0x1]
      %v83 = vlaneseq
      %v84 = vshrl.u32 %v83, 7
      %v85 = vsub.s32 0, %v84
      %v86 = vrot.slane %v81, %v85
      %vm88 = vcmask 130048
      %v90 = vsel %vm88, %v78, 0
      %92 = vmatprep.subr.mxu0 0.0
      %93 = vmatpush1.msra.mxu0 %v79
      %94 = vmatprep.subr.mxu0 0.0
      %95 = vmatpush1.msra.mxu0 %v80
      %96 = vmatprep.subr.mxu0 0.0
      %97 = vmatpush1.msra.mxu0 0.0
      %98 = vmatprep.subr.mxu0 0.0
      %99 = vmatpush1.msra.mxu0 0.0
      %100 = vmatprep.subr.mxu0 0.0
      %101 = vmatpush1.msra.mxu0 0.0
      %102 = vmatprep.subr.mxu0 0.0
      %103 = vmatpush1.msra.mxu0 0.0
      %104 = vmatprep.subr.mxu0 0.0
      %105 = vmatpush1.msra.mxu0 0.0
      %106 = vmatprep.subr.mxu0 0.0
      %107 = vmatpush1.msra.mxu0 0.0
      %108 = vmatprep.subr.mxu0 0.0
      %109 = vmatpush1.msra.mxu0 0.0
      %110 = vmatprep.subr.mxu0 0.0
      %111 = vmatpush1.msra.mxu0 0.0
      %112 = vmatprep.subr.mxu0 0.0
      %113 = vmatpush1.msra.mxu0 0.0
      %114 = vmatprep.subr.mxu0 0.0
      %115 = vmatpush1.msra.mxu0 0.0
      %116 = vmatprep.subr.mxu0 0.0
      %117 = vmatpush1.msra.mxu0 0.0
      %118 = vmatprep.subr.mxu0 0.0
      %119 = vmatpush1.msra.mxu0 0.0
      %120 = vmatprep.subr.mxu0 0.0
      %121 = vmatpush1.msra.mxu0 0.0
      %122 = vmatprep.subr.mxu0 0.0
      %123 = vmatpush1.msra.mxu0 0.0
      %124 = vmatprep.subr.mxu0 0.0
      %125 = vmatpush1.msra.mxu0 0.0
      %126 = vmatprep.subr.mxu0 0.0
      %127 = vmatpush1.msra.mxu0 0.0
      %128 = vmatprep.subr.mxu0 0.0
      %129 = vmatpush1.msra.mxu0 0.0
      %130 = vmatprep.subr.mxu0 0.0
      %131 = vmatpush1.msra.mxu0 0.0
      %132 = vmatprep.subr.mxu0 0.0
      %133 = vmatpush1.msra.mxu0 0.0
      %134 = vmatprep.subr.mxu0 0.0
      %135 = vmatpush1.msra.mxu0 0.0
      %136 = vmatprep.subr.mxu0 0.0
      %137 = vmatpush1.msra.mxu0 0.0
      %138 = vmatprep.subr.mxu0 0.0
      %139 = vmatpush1.msra.mxu0 0.0
      %140 = vmatprep.subr.mxu0 0.0
      %141 = vmatpush1.msra.mxu0 0.0
      %142 = vmatprep.subr.mxu0 0.0
      %143 = vmatpush1.msra.mxu0 0.0
      %144 = vmatprep.subr.mxu0 0.0
      %145 = vmatpush1.msra.mxu0 0.0
      %146 = vmatprep.subr.mxu0 0.0
      %147 = vmatpush1.msra.mxu0 0.0
      %148 = vmatprep.subr.mxu0 0.0
      %149 = vmatpush1.msra.mxu0 0.0
      %150 = vmatprep.subr.mxu0 0.0
      %151 = vmatpush1.msra.mxu0 0.0
      %152 = vmatprep.subr.mxu0 0.0
      %153 = vmatpush1.msra.mxu0 0.0
      %154 = vmatprep.subr.mxu0 0.0
      %155 = vmatpush1.msra.mxu0 0.0
      %156 = vmatprep.mubr.f32.mxu0 0.0
      %157 = vmatmul.mubr.f32.gmra.mrb[0].mxu0 %v90
      %v158 = vpop.f32.mrb[0].mxu0
      %v159 = vadd.f32 %v86, %v158
      %v160 = vpop.f32.mrb[0].mxu0
      %161 = vdwg.mxu0
      %162 = vst [vmem:[#allocation2] sm:$0xff] %v159
    $region49: #{tpu_custom_call.1} parent=1 // pred_fallthru
      _
    %s163 = smul.u32 0, 8
    %s164 = scalar_lea.vmem [#allocation2], %s163
    %v165 = vld [vmem:[%s164] sm:$0xff]
    %v166 = vld [vmem:[#allocation11] sm:$0xff]
    %v167 = vld [vmem:[#allocation13] sm:$0xff]
    %v168 = vld [vmem:[%s4] sm:$0xff]
    %v169 = vld [vmem:[%s4 + $0x8] sm:$0xff]
    %v170 = vld [vmem:[%s4 + $0x10] sm:$0xff]
    %v171 = vld [vmem:[%s4 + $0x18] sm:$0xff]
    %vm172 = vcmask 261120
    %v174 = vsel %vm172, %v166, 0
    %176 = vmatprep.subr.mxu0 0.0
    %177 = vmatpush1.msra.mxu0 %v168
    %178 = vmatprep.subr.mxu0 0.0
    %179 = vmatpush1.msra.mxu0 %v169
    %180 = vmatprep.subr.mxu0 0.0
    %181 = vmatpush1.msra.mxu0 %v170
    %182 = vmatprep.subr.mxu0 0.0
    %183 = vmatpush1.msra.mxu0 %v171
    %184 = vmatprep.subr.mxu0 0.0
    %185 = vmatpush1.msra.mxu0 0.0
    %186 = vmatprep.subr.mxu0 0.0
    %187 = vmatpush1.msra.mxu0 0.0
    %188 = vmatprep.subr.mxu0 0.0
    %189 = vmatpush1.msra.mxu0 0.0
    %190 = vmatprep.subr.mxu0 0.0
    %191 = vmatpush1.msra.mxu0 0.0
    %192 = vmatprep.subr.mxu0 0.0
    %193 = vmatpush1.msra.mxu0 0.0
    %194 = vmatprep.subr.mxu0 0.0
    %195 = vmatpush1.msra.mxu0 0.0
    %196 = vmatprep.subr.mxu0 0.0
    %197 = vmatpush1.msra.mxu0 0.0
    %198 = vmatprep.subr.mxu0 0.0
    %199 = vmatpush1.msra.mxu0 0.0
    %200 = vmatprep.subr.mxu0 0.0
    %201 = vmatpush1.msra.mxu0 0.0
    %202 = vmatprep.subr.mxu0 0.0
    %203 = vmatpush1.msra.mxu0 0.0
    %204 = vmatprep.subr.mxu0 0.0
    %205 = vmatpush1.msra.mxu0 0.0
    %206 = vmatprep.subr.mxu0 0.0
    %207 = vmatpush1.msra.mxu0 0.0
    %208 = vmatprep.subr.mxu0 0.0
    %209 = vmatpush1.msra.mxu0 0.0
    %210 = vmatprep.subr.mxu0 0.0
    %211 = vmatpush1.msra.mxu0 0.0
    %212 = vmatprep.subr.mxu0 0.0
    %213 = vmatpush1.msra.mxu0 0.0
    %214 = vmatprep.subr.mxu0 0.0
    %215 = vmatpush1.msra.mxu0 0.0
    %216 = vmatprep.subr.mxu0 0.0
    %217 = vmatpush1.msra.mxu0 0.0
    %218 = vmatprep.subr.mxu0 0.0
    %219 = vmatpush1.msra.mxu0 0.0
    %220 = vmatprep.subr.mxu0 0.0
    %221 = vmatpush1.msra.mxu0 0.0
    %222 = vmatprep.subr.mxu0 0.0
    %223 = vmatpush1.msra.mxu0 0.0
    %224 = vmatprep.subr.mxu0 0.0
    %225 = vmatpush1.msra.mxu0 0.0
    %226 = vmatprep.subr.mxu0 0.0
    %227 = vmatpush1.msra.mxu0 0.0
    %228 = vmatprep.subr.mxu0 0.0
    %229 = vmatpush1.msra.mxu0 0.0
    %230 = vmatprep.subr.mxu0 0.0
    %231 = vmatpush1.msra.mxu0 0.0
    %232 = vmatprep.subr.mxu0 0.0
    %233 = vmatpush1.msra.mxu0 0.0
    %234 = vmatprep.subr.mxu0 0.0
    %235 = vmatpush1.msra.mxu0 0.0
    %236 = vmatprep.subr.mxu0 0.0
    %237 = vmatpush1.msra.mxu0 0.0
    %238 = vmatprep.subr.mxu0 0.0
    %239 = vmatpush1.msra.mxu0 0.0
    %240 = vmatprep.mubr.f32.mxu0 0.0
    %241 = vmatmul.mubr.f32.gmra.mrb[0].mxu0 %v174
    %v242 = vpop.f32.mrb[0].mxu0
    %v243 = vadd.f32 0.0, %v242
    %v244 = vpop.f32.mrb[0].mxu0
    %245 = vdwg.mxu0
    %v246 = vadd.f32 %v165, %v243
    %v247 = vxor.u32 %v246, 2147483648
    %v248 = vmul.f32 %v247, 1.442695
    %v249 = vpow.pop %v248
    %v250 = vadd.f32 %v249, 1.0
    %v251 = vrcp.pop %v250
    %v252 = vmul.f32 1.0, %v251
    %v253 = vtanh.pop %v246
    %255 = vrot.lane.b32.xlu0 %v167, 32
    %v256 = vpop.permute.xlu0 %255
    %v258 = vmul.f32 %v252, %v256
    %260 = vrot.lane.b32.xlu0 %v253, 64
    %v261 = vpop.permute.xlu0 %260
    %v263 = vmul.f32 %v252, %v261
    %265 = vrot.lane.b32.xlu0 %v263, 32
    %v266 = vpop.permute.xlu0 %265
    %v268 = vadd.f32 %v258, %v266
    %v269 = vtanh.pop %v268
    %271 = vrot.lane.b32.xlu0 %v269, 64
    %v272 = vpop.permute.xlu0 %271
    %v274 = vmul.f32 %v252, %v272
    %276 = vrot.lane.b32.xlu0 %v274, 32
    %v277 = vpop.permute.xlu0 %276
    %279 = vst.msk [vmem:[#allocation11] sm:$0xff] %vm172, %v277
    %281 = vrot.lane.b32.xlu0 %v268, 96
    %v282 = vpop.permute.xlu0 %281
    %284 = vst.msk [vmem:[#allocation13] sm:$0xff] %vm172, %v282
    %s285 = scalar_lea.vmem [#allocation3], %s163
    %286 = vst.msk [vmem:[%s285] sm:$0xff] %vm172, %v277
    // Predicated region
    $region50: #{tpu_custom_call.1} parent=1 // pred_check
      %p287 = pneg %p69
    $region51: #{tpu_custom_call.1} parent=1 // pred_check_branch
      %289 = sbr.rel (%p287) target = $region53
    $region52: #{tpu_custom_call.1} parent=1 // pred_region
      %v290 = vld [vmem:[#allocation3] sm:$0xff]
      %v291 = vld [vmem:[%s6] sm:$0xff]
      %v292 = vld [vmem:[%s6 + $0x8] sm:$0xff]
      %v293 = vld [vmem:[%s6 + $0x10] sm:$0xff]
      %v294 = vld [vmem:[%s6 + $0x18] sm:$0xff]
      %v295 = vld [vmem:[%s7] sm:$0x1]
      %v297 = vlaneseq
      %v298 = vshrl.u32 %v297, 7
      %v299 = vsub.s32 0, %v298
      %v300 = vrot.slane %v295, %v299
      %v303 = vsel %vm172, %v290, 0
      %305 = vmatprep.subr.mxu0 0.0
      %306 = vmatpush1.msra.mxu0 %v291
      %307 = vmatprep.subr.mxu0 0.0
      %308 = vmatpush1.msra.mxu0 %v292
      %309 = vmatprep.subr.mxu0 0.0
      %310 = vmatpush1.msra.mxu0 %v293
      %311 = vmatprep.subr.mxu0 0.0
      %312 = vmatpush1.msra.mxu0 %v294
      %313 = vmatprep.subr.mxu0 0.0
      %314 = vmatpush1.msra.mxu0 0.0
      %315 = vmatprep.subr.mxu0 0.0
      %316 = vmatpush1.msra.mxu0 0.0
      %317 = vmatprep.subr.mxu0 0.0
      %318 = vmatpush1.msra.mxu0 0.0
      %319 = vmatprep.subr.mxu0 0.0
      %320 = vmatpush1.msra.mxu0 0.0
      %321 = vmatprep.subr.mxu0 0.0
      %322 = vmatpush1.msra.mxu0 0.0
      %323 = vmatprep.subr.mxu0 0.0
      %324 = vmatpush1.msra.mxu0 0.0
      %325 = vmatprep.subr.mxu0 0.0
      %326 = vmatpush1.msra.mxu0 0.0
      %327 = vmatprep.subr.mxu0 0.0
      %328 = vmatpush1.msra.mxu0 0.0
      %329 = vmatprep.subr.mxu0 0.0
      %330 = vmatpush1.msra.mxu0 0.0
      %331 = vmatprep.subr.mxu0 0.0
      %332 = vmatpush1.msra.mxu0 0.0
      %333 = vmatprep.subr.mxu0 0.0
      %334 = vmatpush1.msra.mxu0 0.0
      %335 = vmatprep.subr.mxu0 0.0
      %336 = vmatpush1.msra.mxu0 0.0
      %337 = vmatprep.subr.mxu0 0.0
      %338 = vmatpush1.msra.mxu0 0.0
      %339 = vmatprep.subr.mxu0 0.0
      %340 = vmatpush1.msra.mxu0 0.0
      %341 = vmatprep.subr.mxu0 0.0
      %342 = vmatpush1.msra.mxu0 0.0
      %343 = vmatprep.subr.mxu0 0.0
      %344 = vmatpush1.msra.mxu0 0.0
      %345 = vmatprep.subr.mxu0 0.0
      %346 = vmatpush1.msra.mxu0 0.0
      %347 = vmatprep.subr.mxu0 0.0
      %348 = vmatpush1.msra.mxu0 0.0
      %349 = vmatprep.subr.mxu0 0.0
      %350 = vmatpush1.msra.mxu0 0.0
      %351 = vmatprep.subr.mxu0 0.0
      %352 = vmatpush1.msra.mxu0 0.0
      %353 = vmatprep.subr.mxu0 0.0
      %354 = vmatpush1.msra.mxu0 0.0
      %355 = vmatprep.subr.mxu0 0.0
      %356 = vmatpush1.msra.mxu0 0.0
      %357 = vmatprep.subr.mxu0 0.0
      %358 = vmatpush1.msra.mxu0 0.0
      %359 = vmatprep.subr.mxu0 0.0
      %360 = vmatpush1.msra.mxu0 0.0
      %361 = vmatprep.subr.mxu0 0.0
      %362 = vmatpush1.msra.mxu0 0.0
      %363 = vmatprep.subr.mxu0 0.0
      %364 = vmatpush1.msra.mxu0 0.0
      %365 = vmatprep.subr.mxu0 0.0
      %366 = vmatpush1.msra.mxu0 0.0
      %367 = vmatprep.subr.mxu0 0.0
      %368 = vmatpush1.msra.mxu0 0.0
      %369 = vmatprep.mubr.f32.mxu0 0.0
      %370 = vmatmul.mubr.f32.gmra.mrb[0].mxu0 %v303
      %v371 = vpop.f32.mrb[0].mxu0
      %v372 = vadd.f32 %v300, %v371
      %v373 = vpop.f32.mrb[0].mxu0
      %374 = vdwg.mxu0
      %vm375 = vcmask 130048
      %376 = vst.msk [vmem:[#allocation10] sm:$0xff] %vm375, %v372
    $region53: #{tpu_custom_call.1} parent=1 // pred_fallthru
      _
    // Predicated region
    $region54: #{tpu_custom_call.1} parent=1 // pred_check
      _
    $region55: #{tpu_custom_call.1} parent=1 // pred_check_branch
      %378 = sbr.rel (0) target = $region57
    $region56: #{tpu_custom_call.1} parent=1 // pred_region
      %s380 = ssub.s32 128, 128
      %381 = vsyncadd [#allocation6], %s380
      %s383 = sshll.u32 [#allocation10], 4
      %s384 = int_to_ptr.vmem [resolvable:$true] %s383
      %386 = dma.vmem_to_hbm [thread:$0]  %s384, 128, %s8, [#allocation6]
    $region57: #{tpu_custom_call.1} parent=1 // pred_fallthru
      _
    // Predicated region
    $region58: #{tpu_custom_call.1} parent=1 // pred_check
      _
    $region59: #{tpu_custom_call.1} parent=1 // pred_check_branch
      %388 = sbr.rel (0) target = $region61
    $region60: #{tpu_custom_call.1} parent=1 // pred_region
      %s390 = ssub.s32 128, 128
      %391 = vsyncadd [#allocation12], %s390
      %s393 = sshll.u32 [#allocation11], 4
      %s394 = int_to_ptr.vmem [resolvable:$true] %s393
      %396 = dma.vmem_to_hbm [thread:$0]  %s394, 128, %s9, [#allocation12]
    $region61: #{tpu_custom_call.1} parent=1 // pred_fallthru
      _
    // Predicated region
    $region62: #{tpu_custom_call.1} parent=1 // pred_check
      _
    $region63: #{tpu_custom_call.1} parent=1 // pred_check_branch
      %398 = sbr.rel (0) target = $region65
    $region64: #{tpu_custom_call.1} parent=1 // pred_region
      %s400 = ssub.s32 128, 128
      %401 = vsyncadd [#allocation12], %s400
      %s403 = sshll.u32 [#allocation13], 4
      %s404 = int_to_ptr.vmem [resolvable:$true] %s403
      %406 = dma.vmem_to_hbm [thread:$0]  %s404, 128, %s10, [#allocation12]
    $region65: #{tpu_custom_call.1} parent=1 // pred_fallthru
      _
    // Predicated region
    $region66: #{tpu_custom_call.1} parent=1 // pred_check
      _
    $region67: #{tpu_custom_call.1} parent=1 // pred_check_branch
      %408 = sbr.rel (0) target = $region69
    $region68: #{tpu_custom_call.1} parent=1 // pred_region
      %409 = dma.done [#allocation6], 128
    $region69: #{tpu_custom_call.1} parent=1 // pred_fallthru
      _
    // Predicated region
    $region70: #{tpu_custom_call.1} parent=1 // pred_check
      _
    $region71: #{tpu_custom_call.1} parent=1 // pred_check_branch
      %411 = sbr.rel (0) target = $region73
    $region72: #{tpu_custom_call.1} parent=1 // pred_region
      %412 = dma.done [#allocation12], 128
    $region73: #{tpu_custom_call.1} parent=1 // pred_fallthru
      _
    // Predicated region
    $region74: #{tpu_custom_call.1} parent=1 // pred_check
      _
    $region75: #{tpu_custom_call.1} parent=1 // pred_check_branch
      %414 = sbr.rel (0) target = $region77
    $region76: #{tpu_custom_call.1} parent=1 // pred_region
      %415 = dma.done [#allocation12], 128
    $region77: #{tpu_custom_call.1} parent=1 // pred_fallthru
      _
    %416 = vsyncpa [#allocation5], 1
    %417 = vsyncpa [#allocation8], 1
    %418 = vsyncpa [#allocation6], 1
    %419 = vsyncpa [#allocation12], 1

</llo_original>
